<compile_context>
chip_gen: v6e
topology: v6e:2x2x1
jax: 0.10.0
libtpu: 0.0.40
codegen_flags: <defaults>
</compile_context>

<pallas_src>
import functools

import jax
import jax.numpy as jnp
from jax.experimental import pallas as pl
from jax.experimental.pallas import tpu as pltpu

LANES = 128
# 4096 x 128 f32 tile = 2 MiB per input; 2 inputs x 2 pipeline buffers = 8 MiB VMEM,
# comfortably under the default scoped-VMEM limit on v5e (16 MiB) / v6e / v7x (32 MiB).
MAX_BLOCK_ROWS = 4096


def _round_down(x, m):
    return (x // m) * m


def _row_align(dtype):
    # Sublane packing requirement: f32 -> 8 rows, bf16/f16 -> 16, int8/bool -> 32.
    return max(8, 32 // jnp.dtype(dtype).itemsize)


def _jaccard_partial_kernel(p_ref, t_ref, out_ref, *, block_rows):
    # Cast inside the kernel so narrow dtypes stream from HBM at native width.
    p = jax.nn.sigmoid(p_ref[...].astype(jnp.float32))
    t = t_ref[...].astype(jnp.float32)

    # Fold sublane-tile groups with plain VPU adds; keep (8, 128) vreg partials.
    inter = (p * t).reshape(block_rows // 8, 8, LANES).sum(axis=0)
    tot = (p + t).reshape(block_rows // 8, 8, LANES).sum(axis=0)

    out_ref[0, 0, :, :] = inter
    out_ref[0, 1, :, :] = tot


def jaccard_iou_loss(predictions, targets, smooth=1.0):
    """Pallas TPU implementation of JaccardIoULoss.forward (returns a scalar)."""
    # TODO(synk): forward-only; wrap in jax.custom_vjp before using under jax.grad
    # (pallas_call has no autodiff rule).
    total = predictions.size
    n_rows = total // LANES            # number of complete 128-lane rows
    tail = total - n_rows * LANES      # 0..127 leftover elements

    row_align = max(_row_align(predictions.dtype), _row_align(targets.dtype))

    inter_sum = jnp.float32(0.0)
    tot_sum = jnp.float32(0.0)
    covered = 0  # elements reduced by the Pallas kernel

    if n_rows >= row_align:
        # Block sizing: <= MAX_BLOCK_ROWS rows, multiple of the dtype sublane
        # packing, and >= 2 grid steps when the data allows so both v7x
        # TensorCores get work on the "parallel" grid axis.
        target_blocks = max(2, pl.cdiv(n_rows, MAX_BLOCK_ROWS))
        block_rows = max(row_align, _round_down(n_rows // target_blocks, row_align))
        block_rows = min(block_rows, MAX_BLOCK_ROWS)
        num_blocks = n_rows // block_rows
        covered_rows = num_blocks * block_rows
        covered = covered_rows * LANES

        if tail == 0:
            # Contiguous reshape only -- no data copy.  If covered_rows < n_rows
            # the grid simply never visits the trailing rows (JAX epilogue).
            p2d = predictions.reshape(n_rows, LANES)
            t2d = targets.reshape(n_rows, LANES)
        else:
            # Unaligned element count: slice the lane-aligned prefix (copy only
            # in this rare path; no full-array zero padding, no in-kernel mask).
            p2d = predictions.reshape(-1)[:covered].reshape(covered_rows, LANES)
            t2d = targets.reshape(-1)[:covered].reshape(covered_rows, LANES)

        kernel = functools.partial(_jaccard_partial_kernel, block_rows=block_rows)

        parts = pl.pallas_call(
            kernel,
            out_shape=jax.ShapeDtypeStruct((num_blocks, 2, 8, LANES), jnp.float32),
            grid_spec=pltpu.PrefetchScalarGridSpec(
                num_scalar_prefetch=0,
                grid=(num_blocks,),
                in_specs=[
                    pl.BlockSpec((block_rows, LANES), lambda i: (i, 0)),
                    pl.BlockSpec((block_rows, LANES), lambda i: (i, 0)),
                ],
                out_specs=pl.BlockSpec((1, 2, 8, LANES), lambda i: (i, 0, 0, 0)),
            ),
            compiler_params=pltpu.CompilerParams(
                dimension_semantics=("parallel",)
            ),
        )(p2d, t2d)

        inter_sum = jnp.sum(parts[:, 0])
        tot_sum = jnp.sum(parts[:, 1])

    if covered < total:
        # Leftover rows and/or sub-128 tail: tiny plain-JAX epilogue.
        p_rem = jax.nn.sigmoid(predictions.reshape(-1)[covered:].astype(jnp.float32))
        t_rem = targets.reshape(-1)[covered:].astype(jnp.float32)
        inter_sum = inter_sum + jnp.sum(p_rem * t_rem)
        tot_sum = tot_sum + jnp.sum(p_rem + t_rem)

    union = tot_sum - inter_sum
    iou = (inter_sum + smooth) / (union + smooth)
    return 1.0 - iou


def jaccard_iou_loss_ref(predictions, targets, smooth=1.0):
    p = jax.nn.sigmoid(predictions.astype(jnp.float32)).ravel()
    t = targets.astype(jnp.float32).ravel()
    intersection = jnp.sum(p * t)
    total = jnp.sum(p + t)
    union = total - intersection
    return 1.0 - (intersection + smooth) / (union + smooth)


if __name__ == "__main__":
    key = jax.random.PRNGKey(0)
    k1, k2 = jax.random.split(key)

    # Small segmentation-style shapes: NCHW logits + binary masks.
    B, C, H, W = 2, 4, 16, 16
    predictions = jax.random.normal(k1, (B, C, H, W), dtype=jnp.float32)
    targets = (jax.random.uniform(k2, (B, C, H, W)) > 0.5).astype(jnp.float32)

    loss = jaccard_iou_loss(predictions, targets, smooth=1.0)
    loss = jax.block_until_ready(loss)

    ref = jaccard_iou_loss_ref(predictions, targets, smooth=1.0)
    assert jnp.allclose(loss, ref, atol=1e-5, rtol=1e-5), (loss, ref)

    print("KERNEL_OK")
</pallas_src>

<mosaic_0001>
module attributes {stable_mosaic.version = 11 : i64} {
  func.func @_jaccard_partial_kernel(%arg0: i32, %arg1: memref<8x128xf32, #tpu.memory_space<vmem>>, %arg2: memref<8x128xf32, #tpu.memory_space<vmem>>, %arg3: memref<1x2x8x128xf32, #tpu.memory_space<vmem>>) attributes {dimension_semantics = [#tpu.dimension_semantics<parallel>], iteration_bounds = array<i64: 2>, scalar_prefetch = 0 : i64, scratch_operands = 0 : i64, tpu.core_type = #tpu.core_type<tc>, window_params = [{transform_indices = @transform_0, window_bounds = array<i64: 8, 128>}, {transform_indices = @transform_1, window_bounds = array<i64: 8, 128>}, {transform_indices = @transform_2, window_bounds = array<i64: 1, 2, 8, 128>}]} {
    %c0 = arith.constant 0 : index
    %c0_0 = arith.constant 0 : index
    %0 = vector.load %arg1[%c0, %c0_0] : memref<8x128xf32, #tpu.memory_space<vmem>>, vector<8x128xf32>
    %1 = arith.negf %0 : vector<8x128xf32>
    %2 = math.exp %1 : vector<8x128xf32>
    %cst = arith.constant 1.000000e+00 : f32
    %3 = vector.broadcast %cst : f32 to vector<8x128xf32>
    %4 = arith.addf %3, %2 : vector<8x128xf32>
    %5 = arith.divf %3, %4 : vector<8x128xf32>
    %c0_1 = arith.constant 0 : index
    %c0_2 = arith.constant 0 : index
    %6 = vector.load %arg2[%c0_1, %c0_2] : memref<8x128xf32, #tpu.memory_space<vmem>>, vector<8x128xf32>
    %7 = arith.mulf %5, %6 : vector<8x128xf32>
    %8 = vector.shape_cast %7 : vector<8x128xf32> to vector<1x8x128xf32>
    %cst_3 = arith.constant dense<0.000000e+00> : vector<8x128xf32>
    %9 = vector.multi_reduction <add>, %8, %cst_3 [0] : vector<1x8x128xf32> to vector<8x128xf32>
    %10 = arith.addf %5, %6 : vector<8x128xf32>
    %11 = vector.shape_cast %10 : vector<8x128xf32> to vector<1x8x128xf32>
    %cst_4 = arith.constant dense<0.000000e+00> : vector<8x128xf32>
    %12 = vector.multi_reduction <add>, %11, %cst_4 [0] : vector<1x8x128xf32> to vector<8x128xf32>
    %c0_5 = arith.constant 0 : index
    %c0_6 = arith.constant 0 : index
    %c0_7 = arith.constant 0 : index
    %c0_8 = arith.constant 0 : index
    %13 = vector.load %arg3[%c0_5, %c0_6, %c0_7, %c0_8] : memref<1x2x8x128xf32, #tpu.memory_space<vmem>>, vector<1x1x8x128xf32>
    %14 = vector.shape_cast %13 : vector<1x1x8x128xf32> to vector<8x128xf32>
    %15 = vector.shape_cast %9 : vector<8x128xf32> to vector<1x1x8x128xf32>
    tpu.vector_store %arg3[%c0_5, %c0_6, %c0_7, %c0_8], %15 {strides = array<i32>} : memref<1x2x8x128xf32, #tpu.memory_space<vmem>>, vector<1x1x8x128xf32>,
    %c0_9 = arith.constant 0 : index
    %c1 = arith.constant 1 : index
    %c0_10 = arith.constant 0 : index
    %c0_11 = arith.constant 0 : index
    %16 = vector.load %arg3[%c0_9, %c1, %c0_10, %c0_11] : memref<1x2x8x128xf32, #tpu.memory_space<vmem>>, vector<1x1x8x128xf32>
    %17 = vector.shape_cast %16 : vector<1x1x8x128xf32> to vector<8x128xf32>
    %18 = vector.shape_cast %12 : vector<8x128xf32> to vector<1x1x8x128xf32>
    tpu.vector_store %arg3[%c0_9, %c1, %c0_10, %c0_11], %18 {strides = array<i32>} : memref<1x2x8x128xf32, #tpu.memory_space<vmem>>, vector<1x1x8x128xf32>,
    return
  }
  func.func @transform_0(%arg0: i32) -> (i32, i32) {
    %c0_i32 = arith.constant 0 : i32
    %c0_i32_0 = arith.constant 0 : i32
    return %arg0, %c0_i32 : i32, i32
  }
  func.func @transform_1(%arg0: i32) -> (i32, i32) {
    %c0_i32 = arith.constant 0 : i32
    %c0_i32_0 = arith.constant 0 : i32
    return %arg0, %c0_i32 : i32, i32
  }
  func.func @transform_2(%arg0: i32) -> (i32, i32, i32, i32) {
    %c0_i32 = arith.constant 0 : i32
    %c0_i32_0 = arith.constant 0 : i32
    %c0_i32_1 = arith.constant 0 : i32
    %c0_i32_2 = arith.constant 0 : i32
    return %arg0, %c0_i32, %c0_i32_0, %c0_i32_1 : i32, i32, i32, i32
  }
}

</mosaic_0001>

<llo_original>
// kernel: tpu_custom_call.1
$region0: #{tpu_custom_call.1}
  #allocation0 [shape = 'u32[]', space=smem, size = 0x4, offset = 0x4, fixed_abs, tag = 'smem constant byte address 0x4 - core index']
  #allocation1 [shape = 'u32[144,128]{1,0:T(1,128)}', space=vmem, size = 0x12000, scoped, tag = 'internal scratch']
  %s0 = inlined_call_operand.hbm [shape: f32[16,128], index: 0, kind: input, shape index: {}]
  %s1 = inlined_call_operand.hbm [shape: f32[16,128], index: 1, kind: input, shape index: {}]
  %s2 = inlined_call_operand.hbm [shape: f32[2,2,8,128], index: 2, kind: output, shape index: {}]
  %s3 = sld [smem:[#allocation0]]
  $region49: #{tpu_custom_call.1} parent=0
    _
  %s5 = ssub.s32 1, %s3
  %s6 = scalar_select 0, %s5, %s3
  $region1: #{tpu_custom_call.1} parent=0
    #allocation2 [shape = 'u8[8192]{0}', space=vmem, size = 0x2000, scoped, tag = 'input window, operand 0']
    #allocation3 [shape = 's32[2]{0}', space=sflag, size = 0x8, scoped, tag = 'scoped memory for tpu_custom_call.1']
    #allocation4 [shape = 's32[2]{0}', space=sflag, size = 0x8, scoped, tag = 'scoped memory for tpu_custom_call.1']
    #allocation5 [shape = 'u8[8192]{0}', space=vmem, size = 0x2000, scoped, tag = 'input window, operand 1']
    #allocation6 [shape = 's32[2]{0}', space=sflag, size = 0x8, scoped, tag = 'scoped memory for tpu_custom_call.1']
    #allocation7 [shape = 'u8[16384]{0}', space=vmem, size = 0x4000, scoped, tag = 'output window, operand 0']
    %7 = vsyncpa [#allocation3], 0
    %s8 = scalar_lea.sflag [#allocation3], 1
    %9 = vsyncpa %s8, 0
    %10 = vsyncpa [#allocation6], 0
    %s11 = scalar_lea.sflag [#allocation6], 1
    %12 = vsyncpa %s11, 0
    %13 = vsyncpa [#allocation4], 0
    %s14 = scalar_lea.sflag [#allocation4], 1
    %15 = vsyncpa %s14, 0
    loop: start=0, step=1, limit=4
    $region2: #{tpu_custom_call.1} parent=1 // loop_pre_header
      _
    $region3: #{tpu_custom_call.1} parent=1 // loop_header
      %s17 = sphi 0, %s21
      %p18 = scmp.ge.s32.totalorder %s17, 4
      %s27 = sphi 0, %s29
      %s30 = sphi 0, %s27
      %s31 = sphi 0, %s30
      %s47 = sphi 0, %s31
      %s53 = sphi 0, %s55
      %s56 = sphi 0, %s53
      %s57 = sphi 0, %s56
      %s73 = sphi 0, %s57
      %s79 = sphi 0, %s81
      %s82 = sphi 0, %s79
      %s83 = sphi 0, %s82
      %s99 = sphi 0, %s83
    $region4: #{tpu_custom_call.1} parent=1 // loop_header_branch
      %20 = sbr.rel (%p18) target = $region8
    $region5: #{tpu_custom_call.1} parent=1 // loop_body
      %s22 = ssub.s32 %s17, 1
      %s23 = ssub.s32 %s17, 2
      %s24 = sadd.s32 %s17, 1
      %s25 = ssub.s32 %s17, %s24
      %p26 = scmp.eq.s32.totalorder %s25, 0
      %s28 = sadd.s32 %s27, 1
      %s29 = scalar_select %p26, %s27, %s28
      %p32 = pneg %p26
      %p33 = scmp.eq.s32.totalorder %s17, 1
      %p34 = por %p32, %p33
      %p35 = scmp.ne.s32.totalorder %s27, %s30
      %p36 = scmp.eq.s32.totalorder %s17, 0
      %p37 = por %p35, %p36
      %p38 = scmp.ne.s32.totalorder %s27, %s30
      %p39 = scmp.eq.s32.totalorder %s22, 1
      %p40 = por %p38, %p39
      %p41 = scmp.ne.s32.totalorder %s30, %s31
      %p42 = scmp.eq.s32.totalorder %s22, 0
      %p43 = por %p41, %p42
      %p44 = scmp.ne.s32.totalorder %s30, %s31
      %p45 = scmp.eq.s32.totalorder %s23, 1
      %p46 = por %p44, %p45
      %p48 = scmp.ne.s32.totalorder %s31, %s47
      %p49 = scmp.eq.s32.totalorder %s23, 0
      %p50 = por %p48, %p49
      %s51 = ssub.s32 %s17, %s24
      %p52 = scmp.eq.s32.totalorder %s51, 0
      %s54 = sadd.s32 %s53, 1
      %s55 = scalar_select %p52, %s53, %s54
      %p58 = pneg %p52
      %p59 = scmp.eq.s32.totalorder %s17, 1
      %p60 = por %p58, %p59
      %p61 = scmp.ne.s32.totalorder %s53, %s56
      %p62 = scmp.eq.s32.totalorder %s17, 0
      %p63 = por %p61, %p62
      %p64 = scmp.ne.s32.totalorder %s53, %s56
      %p65 = scmp.eq.s32.totalorder %s22, 1
      %p66 = por %p64, %p65
      %p67 = scmp.ne.s32.totalorder %s56, %s57
      %p68 = scmp.eq.s32.totalorder %s22, 0
      %p69 = por %p67, %p68
      %p70 = scmp.ne.s32.totalorder %s56, %s57
      %p71 = scmp.eq.s32.totalorder %s23, 1
      %p72 = por %p70, %p71
      %p74 = scmp.ne.s32.totalorder %s57, %s73
      %p75 = scmp.eq.s32.totalorder %s23, 0
      %p76 = por %p74, %p75
      %s77 = ssub.s32 %s17, %s24
      %p78 = scmp.eq.s32.totalorder %s77, 0
      %s80 = sadd.s32 %s79, 1
      %s81 = scalar_select %p78, %s79, %s80
      %p84 = pneg %p78
      %p85 = scmp.eq.s32.totalorder %s17, 1
      %p86 = por %p84, %p85
      %p87 = scmp.ne.s32.totalorder %s79, %s82
      %p88 = scmp.eq.s32.totalorder %s17, 0
      %p89 = por %p87, %p88
      %p90 = scmp.ne.s32.totalorder %s79, %s82
      %p91 = scmp.eq.s32.totalorder %s22, 1
      %p92 = por %p90, %p91
      %p93 = scmp.ne.s32.totalorder %s82, %s83
      %p94 = scmp.eq.s32.totalorder %s22, 0
      %p95 = por %p93, %p94
      %p96 = scmp.ne.s32.totalorder %s82, %s83
      %p97 = scmp.eq.s32.totalorder %s23, 1
      %p98 = por %p96, %p97
      %p100 = scmp.ne.s32.totalorder %s83, %s99
      %p101 = scmp.eq.s32.totalorder %s23, 0
      %p102 = por %p100, %p101
      %p103 = scmp.le.s32.totalorder 1, %s17
      %p104 = scmp.lt.s32.totalorder %s17, 3
      %p105 = pnand %p103, %p104
      %p106 = pneg %p105
      // Predicated region
      $region9: #{tpu_custom_call.1} parent=5 // pred_check
        _
      $region10: #{tpu_custom_call.1} parent=5 // pred_check_branch
        %108 = sbr.rel (%p105) target = $region12
      $region11: #{tpu_custom_call.1} parent=5 // pred_region
        %s109 = ssub.s32 %s17, 1
      $region12: #{tpu_custom_call.1} parent=5 // pred_fallthru
        _
      %p110 = scmp.lt.s32.totalorder %s17, 2
      // Predicated region
      $region13: #{tpu_custom_call.1} parent=5 // pred_check
        %p111 = pneg %p110
      $region14: #{tpu_custom_call.1} parent=5 // pred_check_branch
        %113 = sbr.rel (%p111) target = $region16
      $region15: #{tpu_custom_call.1} parent=5 // pred_region
        // Predicated region
        $region17: #{tpu_custom_call.1} parent=15 // pred_check
          %p114 = pneg %p37
        $region18: #{tpu_custom_call.1} parent=15 // pred_check_branch
          %116 = sbr.rel (%p114) target = $region20
        $region19: #{tpu_custom_call.1} parent=15 // pred_region
          %s117 = sand.u32 %s27, 1
          %s118 = scalar_lea.sflag [#allocation3], %s117
          %s119 = sand.u32 %s27, 1
          %s120 = smul.addr %s119, 8
          %s121 = scalar_lea.vmem [#allocation2], %s120
          %s123 = ssub.s32 128, 128
          %124 = vsyncadd %s118, %s123
          %s125 = smul.addr %s17, 128
          %s126 = scalar_lea.hbm %s0, %s125
          %s128 = sshll.u32 %s121, 4
          %s129 = int_to_ptr.vmem [resolvable:$true] %s128
          %131 = dma.hbm_to_vmem [thread:$0]  %s126, 128, %s129, %s118
        $region20: #{tpu_custom_call.1} parent=15 // pred_fallthru
          _
        // Predicated region
        $region21: #{tpu_custom_call.1} parent=15 // pred_check
          %p132 = pneg %p63
        $region22: #{tpu_custom_call.1} parent=15 // pred_check_branch
          %134 = sbr.rel (%p132) target = $region24
        $region23: #{tpu_custom_call.1} parent=15 // pred_region
          %s135 = sand.u32 %s53, 1
          %s136 = scalar_lea.sflag [#allocation6], %s135
          %s137 = sand.u32 %s53, 1
          %s138 = smul.addr %s137, 8
          %s139 = scalar_lea.vmem [#allocation5], %s138
          %s141 = ssub.s32 128, 128
          %142 = vsyncadd %s136, %s141
          %s143 = smul.addr %s17, 128
          %s144 = scalar_lea.hbm %s1, %s143
          %s146 = sshll.u32 %s139, 4
          %s147 = int_to_ptr.vmem [resolvable:$true] %s146
          %149 = dma.hbm_to_vmem [thread:$0]  %s144, 128, %s147, %s136
        $region24: #{tpu_custom_call.1} parent=15 // pred_fallthru
          _
      $region16: #{tpu_custom_call.1} parent=5 // pred_fallthru
        _
      %p150 = scmp.le.s32.totalorder 1, %s17
      %p151 = scmp.lt.s32.totalorder %s17, 3
      %p152 = pnand %p150, %p151
      %p153 = pneg %p152
      // Predicated region
      $region25: #{tpu_custom_call.1} parent=5 // pred_check
        _
      $region26: #{tpu_custom_call.1} parent=5 // pred_check_branch
        %155 = sbr.rel (%p152) target = $region28
      $region27: #{tpu_custom_call.1} parent=5 // pred_region
        %s156 = ssub.s32 %s17, 1
        %s157 = sand.u32 %s30, 1
        %s158 = scalar_lea.sflag [#allocation3], %s157
        %s159 = sand.u32 %s30, 1
        %s160 = smul.addr %s159, 8
        %s161 = scalar_lea.vmem [#allocation2], %s160
        // Predicated region
        $region29: #{tpu_custom_call.1} parent=27 // pred_check
          %p162 = pneg %p43
        $region30: #{tpu_custom_call.1} parent=27 // pred_check_branch
          %164 = sbr.rel (%p162) target = $region32
        $region31: #{tpu_custom_call.1} parent=27 // pred_region
          %165 = dma.done %s158, 128
        $region32: #{tpu_custom_call.1} parent=27 // pred_fallthru
          _
        %s166 = sand.u32 %s56, 1
        %s167 = scalar_lea.sflag [#allocation6], %s166
        %s168 = sand.u32 %s56, 1
        %s169 = smul.addr %s168, 8
        %s170 = scalar_lea.vmem [#allocation5], %s169
        // Predicated region
        $region33: #{tpu_custom_call.1} parent=27 // pred_check
          %p171 = pneg %p69
        $region34: #{tpu_custom_call.1} parent=27 // pred_check_branch
          %173 = sbr.rel (%p171) target = $region36
        $region35: #{tpu_custom_call.1} parent=27 // pred_region
          %174 = dma.done %s167, 128
        $region36: #{tpu_custom_call.1} parent=27 // pred_fallthru
          _
        %s175 = sand.u32 %s30, 1
        %s176 = scalar_lea.sflag [#allocation3], %s175
        %s177 = sand.u32 %s30, 1
        %s178 = smul.addr %s177, 8
        %s179 = scalar_lea.vmem [#allocation2], %s178
        %p180 = pneg %p43
        %p181 = pneg %p40
        %s182 = sand.u32 %s56, 1
        %s183 = scalar_lea.sflag [#allocation6], %s182
        %s184 = sand.u32 %s56, 1
        %s185 = smul.addr %s184, 8
        %s186 = scalar_lea.vmem [#allocation5], %s185
        %p187 = pneg %p69
        %p188 = pneg %p66
        %p189 = pneg %p95
        %p190 = pneg %p92
        %s191 = sand.u32 %s82, 1
        %s192 = scalar_lea.sflag [#allocation4], %s191
        %s193 = sand.u32 %s82, 1
        %s194 = smul.addr %s193, 16
        %s195 = scalar_lea.vmem [#allocation7], %s194
        %v196 = vld [vmem:[%s161] sm:$0xff]
        %v197 = vxor.u32 %v196, 2147483648
        %v198 = vmul.f32 %v197, 1.442695
        %v199 = vpow.pop %v198
        %v200 = vadd.f32 %v199, 1.0
        %v201 = vrcp.pop %v200
        %v202 = vmul.f32 1.0, %v201
        %v203 = vld [vmem:[%s170] sm:$0xff]
        %v204 = vmul.f32 %v202, %v203
        %v205 = vadd.f32 %v204, 0.0
        %v206 = vadd.f32 %v202, %v203
        %v207 = vadd.f32 %v206, 0.0
        %208 = vst [vmem:[%s195] sm:$0xff] %v205
        %s209 = scalar_lea.vmem %s195, 8 [#allocation7]
        %210 = vst [vmem:[%s209] sm:$0xff] %v207
        %s211 = sand.u32 %s82, 1
        %s212 = scalar_lea.sflag [#allocation4], %s211
        %s213 = sand.u32 %s82, 1
        %s214 = smul.addr %s213, 16
        %s215 = scalar_lea.vmem [#allocation7], %s214
        // Predicated region
        $region37: #{tpu_custom_call.1} parent=27 // pred_check
          %p216 = pneg %p92
        $region38: #{tpu_custom_call.1} parent=27 // pred_check_branch
          %218 = sbr.rel (%p216) target = $region40
        $region39: #{tpu_custom_call.1} parent=27 // pred_region
          %s220 = ssub.s32 256, 256
          %221 = vsyncadd %s212, %s220
          %s222 = smul.addr %s22, 2
          %s223 = smul.addr %s222, 128
          %s224 = scalar_lea.hbm %s2, %s223
          %s225 = sshll.u32 %s215, 4
          %s226 = int_to_ptr.vmem [resolvable:$true] %s225
          %231 = dma.vmem_to_hbm [thread:$0]  %s226, 256, %s224, %s212, 128, 128, 8
        $region40: #{tpu_custom_call.1} parent=27 // pred_fallthru
          _
      $region28: #{tpu_custom_call.1} parent=5 // pred_fallthru
        _
      %p232 = scmp.le.s32.totalorder 2, %s17
      // Predicated region
      $region41: #{tpu_custom_call.1} parent=5 // pred_check
        %p233 = pneg %p232
      $region42: #{tpu_custom_call.1} parent=5 // pred_check_branch
        %235 = sbr.rel (%p233) target = $region44
      $region43: #{tpu_custom_call.1} parent=5 // pred_region
        %s236 = ssub.s32 %s17, 2
        // Predicated region
        $region45: #{tpu_custom_call.1} parent=43 // pred_check
          %p237 = pneg %p98
        $region46: #{tpu_custom_call.1} parent=43 // pred_check_branch
          %239 = sbr.rel (%p237) target = $region48
        $region47: #{tpu_custom_call.1} parent=43 // pred_region
          %s240 = sand.u32 %s83, 1
          %s241 = scalar_lea.sflag [#allocation4], %s240
          %s242 = sand.u32 %s83, 1
          %s243 = smul.addr %s242, 16
          %s244 = scalar_lea.vmem [#allocation7], %s243
          %245 = dma.done %s241, 256
        $region48: #{tpu_custom_call.1} parent=43 // pred_fallthru
          _
      $region44: #{tpu_custom_call.1} parent=5 // pred_fallthru
        _
    $region6: #{tpu_custom_call.1} parent=1 // loop_footer
      %s21 = sadd.s32 1, %s17
    $region7: #{tpu_custom_call.1} parent=1 // loop_footer_branch
      %16 = sbr.rel target = $region3
    $region8: #{tpu_custom_call.1} parent=1 // loop_exit
      _
    %246 = vsyncpa [#allocation3], 1
    %s247 = scalar_lea.sflag [#allocation3], 1
    %248 = vsyncpa %s247, 1
    %249 = vsyncpa [#allocation6], 1
    %s250 = scalar_lea.sflag [#allocation6], 1
    %251 = vsyncpa %s250, 1
    %252 = vsyncpa [#allocation4], 1
    %s253 = scalar_lea.sflag [#allocation4], 1
    %254 = vsyncpa %s253, 1

</llo_original>
